<compile_context>
chip_gen: v6e
topology: v6e:2x2x1
jax: 0.10.0
libtpu: 0.0.40
codegen_flags: <defaults>
</compile_context>

<pallas_src>
import math
import functools

import jax
import jax.numpy as jnp
from jax import lax
from jax.experimental import pallas as pl
from jax.experimental.pallas import tpu as pltpu


# ----------------------------------------------------------------------------
# Kernel: gather rows -> silu(x @ W1 + b1) -> silu(h @ W2 + b2)
# ----------------------------------------------------------------------------
def _diffusion_embedding_kernel(steps_ref,        # SMEM (B_pad,) i32  [scalar prefetch]
                                emb_ref,          # VMEM (max_steps, D2) f32
                                w1_ref, b1_ref,   # VMEM (D2, Pp) bf16 / (1, Pp) f32
                                w2_ref, b2_ref,   # VMEM (Pp, Pp) bf16 / (1, Pp) f32
                                o_ref,            # VMEM (TILE_B, Pp) f32
                                xbuf_ref):        # VMEM (TILE_B, D2) f32 scratch
    tile_b = xbuf_ref.shape[0]
    base = pl.program_id(0) * tile_b

    # ---- fused gather: embedding[diffusion_step] -> xbuf ---------------------
    def gather_row(i, carry):
        step = steps_ref[base + i]
        xbuf_ref[pl.ds(i, 1), :] = emb_ref[pl.ds(step, 1), :]
        return carry

    lax.fori_loop(0, tile_b, gather_row, 0, unroll=True)

    # ---- projection1 + SiLU (bf16 MXU inputs, f32 accumulate & elementwise) --
    x = xbuf_ref[...].astype(jnp.bfloat16)
    h = jnp.dot(x, w1_ref[...], preferred_element_type=jnp.float32) + b1_ref[...]
    h = h * pl.reciprocal(1.0 + jnp.exp(-h), approx=True)            # SiLU (EUP recip)

    # ---- projection2 + SiLU ---------------------------------------------------
    y = jnp.dot(h.astype(jnp.bfloat16), w2_ref[...],
                preferred_element_type=jnp.float32) + b2_ref[...]
    y = y * pl.reciprocal(1.0 + jnp.exp(-y), approx=True)

    o_ref[...] = y.astype(o_ref.dtype)


# ----------------------------------------------------------------------------
# Wrapper: padding to lane-dense shapes + pallas_call
# ----------------------------------------------------------------------------
def _round_up(x, m):
    return (x + m - 1) // m * m


@functools.partial(jax.jit, static_argnames=("tile_b",))
def diffusion_embedding(diffusion_step, embedding, w1, b1, w2, b2, tile_b=8):
    """Forward pass of DiffusionEmbedding.

    diffusion_step: (B,) int
    embedding:      (max_steps, 2*dim) f32 sinusoidal table
    w1: (2*dim, P), b1: (P,), w2: (P, P), b2: (P,)   (Linear weights transposed
    vs. PyTorch, i.e. y = x @ W + b).
    """
    B = diffusion_step.shape[0]
    max_steps, d2 = embedding.shape
    p = w1.shape[1]

    p_pad = _round_up(p, 128)          # lane-dense feature dim (unmasked stores)
    b_pad = _round_up(B, tile_b)       # whole batch tiles

    # zero-pad weights/biases; padded columns stay exactly zero through SiLU
    w1p = jnp.zeros((d2, p_pad), jnp.bfloat16).at[:, :p].set(w1.astype(jnp.bfloat16))
    b1p = jnp.zeros((1, p_pad), jnp.float32).at[0, :p].set(b1)
    w2p = jnp.zeros((p_pad, p_pad), jnp.bfloat16).at[:p, :p].set(w2.astype(jnp.bfloat16))
    b2p = jnp.zeros((1, p_pad), jnp.float32).at[0, :p].set(b2)
    steps = jnp.zeros((b_pad,), jnp.int32).at[:B].set(diffusion_step.astype(jnp.int32))

    grid = (b_pad // tile_b,)

    out = pl.pallas_call(
        _diffusion_embedding_kernel,
        out_shape=jax.ShapeDtypeStruct((b_pad, p_pad), jnp.float32),
        grid_spec=pltpu.PrefetchScalarGridSpec(
            num_scalar_prefetch=1,
            grid=grid,
            in_specs=[
                pl.BlockSpec((max_steps, d2), lambda i, s: (0, 0)),   # table resident
                pl.BlockSpec((d2, p_pad), lambda i, s: (0, 0)),       # W1 resident
                pl.BlockSpec((1, p_pad), lambda i, s: (0, 0)),        # b1
                pl.BlockSpec((p_pad, p_pad), lambda i, s: (0, 0)),    # W2 resident
                pl.BlockSpec((1, p_pad), lambda i, s: (0, 0)),        # b2
            ],
            out_specs=pl.BlockSpec((tile_b, p_pad), lambda i, s: (i, 0)),
            scratch_shapes=[pltpu.VMEM((tile_b, d2), jnp.float32)],
        ),
        compiler_params=pltpu.CompilerParams(
            dimension_semantics=("parallel",),
        ),
    )(steps, embedding, w1p, b1p, w2p, b2p)

    return out[:B, :p]


# ----------------------------------------------------------------------------
# Module glue: embedding table build (matches the PyTorch spec) + param init
# ----------------------------------------------------------------------------
def build_embedding(dim, max_steps=500):
    steps = jnp.arange(max_steps, dtype=jnp.float32)[:, None]        # (T, 1)
    dims = jnp.arange(dim, dtype=jnp.float32)[None, :]               # (1, dim)
    table = steps * (10.0 ** (dims * 4.0 / dim))                     # spec: /dim
    return jnp.concatenate([jnp.sin(table), jnp.cos(table)], axis=1)  # (T, 2*dim)


def init_params(key, dim, proj_dim):
    """Deterministic init mimicking nn.Linear defaults (uniform +/- 1/sqrt(fan_in))."""
    k1, k2, k3, k4 = jax.random.split(key, 4)
    in1 = dim * 2
    bound1 = 1.0 / math.sqrt(in1)
    w1 = jax.random.uniform(k1, (in1, proj_dim), jnp.float32, -bound1, bound1)
    b1 = jax.random.uniform(k2, (proj_dim,), jnp.float32, -bound1, bound1)
    bound2 = 1.0 / math.sqrt(proj_dim)
    w2 = jax.random.uniform(k3, (proj_dim, proj_dim), jnp.float32, -bound2, bound2)
    b2 = jax.random.uniform(k4, (proj_dim,), jnp.float32, -bound2, bound2)
    return w1, b1, w2, b2


def _reference(diffusion_step, embedding, w1, b1, w2, b2):
    # Matches the kernel's matmul precision (bf16 inputs, f32 accumulation).
    x = embedding[diffusion_step].astype(jnp.bfloat16)
    h = jnp.dot(x, w1.astype(jnp.bfloat16), preferred_element_type=jnp.float32) + b1
    h = h * jax.nn.sigmoid(h)
    y = jnp.dot(h.astype(jnp.bfloat16), w2.astype(jnp.bfloat16),
                preferred_element_type=jnp.float32) + b2
    return y * jax.nn.sigmoid(y)


if __name__ == "__main__":
    dim = 16          # embedding rows of 2*dim = 32
    proj_dim = 32     # padded to 128 lanes inside the wrapper
    max_steps = 500
    batch = 8

    key = jax.random.PRNGKey(0)
    k_params, k_steps = jax.random.split(key)

    embedding = build_embedding(dim, max_steps)
    w1, b1, w2, b2 = init_params(k_params, dim, proj_dim)
    diffusion_step = jax.random.randint(k_steps, (batch,), 0, max_steps)

    out = diffusion_embedding(diffusion_step, embedding, w1, b1, w2, b2)
    out = jax.block_until_ready(out)

    ref = _reference(diffusion_step, embedding, w1, b1, w2, b2)
    assert out.shape == (batch, proj_dim)
    assert jnp.allclose(out, ref, atol=1e-2, rtol=1e-2), float(jnp.max(jnp.abs(out - ref)))

    print("KERNEL_OK")
</pallas_src>

<mosaic_0001>
module attributes {stable_mosaic.version = 11 : i64} {
  func.func @_diffusion_embedding_kernel(%arg0: i32, %arg1: memref<8xi32, #tpu.memory_space<smem>>, %arg2: memref<500x32xf32, #tpu.memory_space<vmem>>, %arg3: memref<32x128xbf16, #tpu.memory_space<vmem>>, %arg4: memref<1x128xf32, #tpu.memory_space<vmem>>, %arg5: memref<128x128xbf16, #tpu.memory_space<vmem>>, %arg6: memref<1x128xf32, #tpu.memory_space<vmem>>, %arg7: memref<8x128xf32, #tpu.memory_space<vmem>>, %arg8: memref<8x32xf32, #tpu.memory_space<vmem>>) attributes {dimension_semantics = [#tpu.dimension_semantics<parallel>], iteration_bounds = array<i64: 1>, scalar_prefetch = 1 : i64, scratch_operands = 1 : i64, tpu.core_type = #tpu.core_type<tc>, window_params = [{pipeline_mode = #tpu.pipeline_mode<synchronous>, transform_indices = @transform_0, window_bounds = array<i64: 500, 32>}, {pipeline_mode = #tpu.pipeline_mode<synchronous>, transform_indices = @transform_1, window_bounds = array<i64: 32, 128>}, {pipeline_mode = #tpu.pipeline_mode<synchronous>, transform_indices = @transform_2, window_bounds = array<i64: 1, 128>}, {pipeline_mode = #tpu.pipeline_mode<synchronous>, transform_indices = @transform_3, window_bounds = array<i64: 128, 128>}, {pipeline_mode = #tpu.pipeline_mode<synchronous>, transform_indices = @transform_4, window_bounds = array<i64: 1, 128>}, {transform_indices = @transform_5, window_bounds = array<i64: 8, 128>}]} {
    %c8_i32 = arith.constant 8 : i32
    %0 = arith.muli %arg0, %c8_i32 : i32
    %c0_i32 = arith.constant 0 : i32
    %1 = arith.addi %0, %c0_i32 : i32
    %2 = arith.index_cast %1 : i32 to index
    %3 = memref.load %arg1[%2] : memref<8xi32, #tpu.memory_space<smem>>
    %4 = arith.index_cast %3 : i32 to index
    %c0 = arith.constant 0 : index
    %5 = vector.load %arg2[%4, %c0] : memref<500x32xf32, #tpu.memory_space<vmem>>, vector<1x32xf32>
    %6 = arith.index_cast %c0_i32 : i32 to index
    %c0_0 = arith.constant 0 : index
    %7 = vector.load %arg8[%6, %c0_0] : memref<8x32xf32, #tpu.memory_space<vmem>>, vector<1x32xf32>
    tpu.vector_store %arg8[%6, %c0_0], %5 {strides = array<i32>} : memref<8x32xf32, #tpu.memory_space<vmem>>, vector<1x32xf32>,
    %c1_i32 = arith.constant 1 : i32
    %8 = arith.addi %0, %c1_i32 : i32
    %9 = arith.index_cast %8 : i32 to index
    %10 = memref.load %arg1[%9] : memref<8xi32, #tpu.memory_space<smem>>
    %11 = arith.index_cast %10 : i32 to index
    %c0_1 = arith.constant 0 : index
    %12 = vector.load %arg2[%11, %c0_1] : memref<500x32xf32, #tpu.memory_space<vmem>>, vector<1x32xf32>
    %13 = arith.index_cast %c1_i32 : i32 to index
    %c0_2 = arith.constant 0 : index
    %14 = vector.load %arg8[%13, %c0_2] : memref<8x32xf32, #tpu.memory_space<vmem>>, vector<1x32xf32>
    tpu.vector_store %arg8[%13, %c0_2], %12 {strides = array<i32>} : memref<8x32xf32, #tpu.memory_space<vmem>>, vector<1x32xf32>,
    %c2_i32 = arith.constant 2 : i32
    %15 = arith.addi %0, %c2_i32 : i32
    %16 = arith.index_cast %15 : i32 to index
    %17 = memref.load %arg1[%16] : memref<8xi32, #tpu.memory_space<smem>>
    %18 = arith.index_cast %17 : i32 to index
    %c0_3 = arith.constant 0 : index
    %19 = vector.load %arg2[%18, %c0_3] : memref<500x32xf32, #tpu.memory_space<vmem>>, vector<1x32xf32>
    %20 = arith.index_cast %c2_i32 : i32 to index
    %c0_4 = arith.constant 0 : index
    %21 = vector.load %arg8[%20, %c0_4] : memref<8x32xf32, #tpu.memory_space<vmem>>, vector<1x32xf32>
    tpu.vector_store %arg8[%20, %c0_4], %19 {strides = array<i32>} : memref<8x32xf32, #tpu.memory_space<vmem>>, vector<1x32xf32>,
    %c3_i32 = arith.constant 3 : i32
    %22 = arith.addi %0, %c3_i32 : i32
    %23 = arith.index_cast %22 : i32 to index
    %24 = memref.load %arg1[%23] : memref<8xi32, #tpu.memory_space<smem>>
    %25 = arith.index_cast %24 : i32 to index
    %c0_5 = arith.constant 0 : index
    %26 = vector.load %arg2[%25, %c0_5] : memref<500x32xf32, #tpu.memory_space<vmem>>, vector<1x32xf32>
    %27 = arith.index_cast %c3_i32 : i32 to index
    %c0_6 = arith.constant 0 : index
    %28 = vector.load %arg8[%27, %c0_6] : memref<8x32xf32, #tpu.memory_space<vmem>>, vector<1x32xf32>
    tpu.vector_store %arg8[%27, %c0_6], %26 {strides = array<i32>} : memref<8x32xf32, #tpu.memory_space<vmem>>, vector<1x32xf32>,
    %c4_i32 = arith.constant 4 : i32
    %29 = arith.addi %0, %c4_i32 : i32
    %30 = arith.index_cast %29 : i32 to index
    %31 = memref.load %arg1[%30] : memref<8xi32, #tpu.memory_space<smem>>
    %32 = arith.index_cast %31 : i32 to index
    %c0_7 = arith.constant 0 : index
    %33 = vector.load %arg2[%32, %c0_7] : memref<500x32xf32, #tpu.memory_space<vmem>>, vector<1x32xf32>
    %34 = arith.index_cast %c4_i32 : i32 to index
    %c0_8 = arith.constant 0 : index
    %35 = vector.load %arg8[%34, %c0_8] : memref<8x32xf32, #tpu.memory_space<vmem>>, vector<1x32xf32>
    tpu.vector_store %arg8[%34, %c0_8], %33 {strides = array<i32>} : memref<8x32xf32, #tpu.memory_space<vmem>>, vector<1x32xf32>,
    %c5_i32 = arith.constant 5 : i32
    %36 = arith.addi %0, %c5_i32 : i32
    %37 = arith.index_cast %36 : i32 to index
    %38 = memref.load %arg1[%37] : memref<8xi32, #tpu.memory_space<smem>>
    %39 = arith.index_cast %38 : i32 to index
    %c0_9 = arith.constant 0 : index
    %40 = vector.load %arg2[%39, %c0_9] : memref<500x32xf32, #tpu.memory_space<vmem>>, vector<1x32xf32>
    %41 = arith.index_cast %c5_i32 : i32 to index
    %c0_10 = arith.constant 0 : index
    %42 = vector.load %arg8[%41, %c0_10] : memref<8x32xf32, #tpu.memory_space<vmem>>, vector<1x32xf32>
    tpu.vector_store %arg8[%41, %c0_10], %40 {strides = array<i32>} : memref<8x32xf32, #tpu.memory_space<vmem>>, vector<1x32xf32>,
    %c6_i32 = arith.constant 6 : i32
    %43 = arith.addi %0, %c6_i32 : i32
    %44 = arith.index_cast %43 : i32 to index
    %45 = memref.load %arg1[%44] : memref<8xi32, #tpu.memory_space<smem>>
    %46 = arith.index_cast %45 : i32 to index
    %c0_11 = arith.constant 0 : index
    %47 = vector.load %arg2[%46, %c0_11] : memref<500x32xf32, #tpu.memory_space<vmem>>, vector<1x32xf32>
    %48 = arith.index_cast %c6_i32 : i32 to index
    %c0_12 = arith.constant 0 : index
    %49 = vector.load %arg8[%48, %c0_12] : memref<8x32xf32, #tpu.memory_space<vmem>>, vector<1x32xf32>
    tpu.vector_store %arg8[%48, %c0_12], %47 {strides = array<i32>} : memref<8x32xf32, #tpu.memory_space<vmem>>, vector<1x32xf32>,
    %c7_i32 = arith.constant 7 : i32
    %50 = arith.addi %0, %c7_i32 : i32
    %51 = arith.index_cast %50 : i32 to index
    %52 = memref.load %arg1[%51] : memref<8xi32, #tpu.memory_space<smem>>
    %53 = arith.index_cast %52 : i32 to index
    %c0_13 = arith.constant 0 : index
    %54 = vector.load %arg2[%53, %c0_13] : memref<500x32xf32, #tpu.memory_space<vmem>>, vector<1x32xf32>
    %55 = arith.index_cast %c7_i32 : i32 to index
    %c0_14 = arith.constant 0 : index
    %56 = vector.load %arg8[%55, %c0_14] : memref<8x32xf32, #tpu.memory_space<vmem>>, vector<1x32xf32>
    tpu.vector_store %arg8[%55, %c0_14], %54 {strides = array<i32>} : memref<8x32xf32, #tpu.memory_space<vmem>>, vector<1x32xf32>,
    %c8_i32_15 = arith.constant 8 : i32
    %c0_16 = arith.constant 0 : index
    %c0_17 = arith.constant 0 : index
    %57 = vector.load %arg8[%c0_16, %c0_17] : memref<8x32xf32, #tpu.memory_space<vmem>>, vector<8x32xf32>
    %58 = arith.truncf %57 : vector<8x32xf32> to vector<8x32xbf16>
    %c0_18 = arith.constant 0 : index
    %c0_19 = arith.constant 0 : index
    %59 = vector.load %arg3[%c0_18, %c0_19] : memref<32x128xbf16, #tpu.memory_space<vmem>>, vector<32x128xbf16>
    %cst = arith.constant dense<0.000000e+00> : vector<8x128xf32>
    %60 = tpu.matmul %58, %59, %cst {dimension_numbers = #tpu.dot_dimension_numbers<[1], [0], [0], [1], [0, 0, 1, 1], [], []>} : vector<8x32xbf16>, vector<32x128xbf16>, vector<8x128xf32> -> vector<8x128xf32>
    %c0_20 = arith.constant 0 : index
    %c0_21 = arith.constant 0 : index
    %61 = vector.load %arg4[%c0_20, %c0_21] : memref<1x128xf32, #tpu.memory_space<vmem>>, vector<1x128xf32>
    %62 = vector.broadcast %61 : vector<1x128xf32> to vector<8x128xf32>
    %63 = arith.addf %60, %62 : vector<8x128xf32>
    %cst_22 = arith.constant 0.000000e+00 : f32
    %64 = vector.broadcast %cst_22 : f32 to vector<8x128xf32>
    %65 = arith.subf %64, %63 : vector<8x128xf32>
    %66 = math.exp %65 : vector<8x128xf32>
    %cst_23 = arith.constant 1.000000e+00 : f32
    %67 = vector.broadcast %cst_23 : f32 to vector<8x128xf32>
    %68 = arith.addf %67, %66 : vector<8x128xf32>
    %69 = tpu.reciprocal %68 {approx = true} : vector<8x128xf32> -> vector<8x128xf32>
    %70 = arith.mulf %63, %69 : vector<8x128xf32>
    %71 = arith.truncf %70 : vector<8x128xf32> to vector<8x128xbf16>
    %c0_24 = arith.constant 0 : index
    %c0_25 = arith.constant 0 : index
    %72 = vector.load %arg5[%c0_24, %c0_25] : memref<128x128xbf16, #tpu.memory_space<vmem>>, vector<128x128xbf16>
    %cst_26 = arith.constant dense<0.000000e+00> : vector<8x128xf32>
    %73 = tpu.matmul %71, %72, %cst_26 {dimension_numbers = #tpu.dot_dimension_numbers<[1], [0], [0], [1], [0, 0, 1, 1], [], []>} : vector<8x128xbf16>, vector<128x128xbf16>, vector<8x128xf32> -> vector<8x128xf32>
    %c0_27 = arith.constant 0 : index
    %c0_28 = arith.constant 0 : index
    %74 = vector.load %arg6[%c0_27, %c0_28] : memref<1x128xf32, #tpu.memory_space<vmem>>, vector<1x128xf32>
    %75 = vector.broadcast %74 : vector<1x128xf32> to vector<8x128xf32>
    %76 = arith.addf %73, %75 : vector<8x128xf32>
    %cst_29 = arith.constant 0.000000e+00 : f32
    %77 = vector.broadcast %cst_29 : f32 to vector<8x128xf32>
    %78 = arith.subf %77, %76 : vector<8x128xf32>
    %79 = math.exp %78 : vector<8x128xf32>
    %cst_30 = arith.constant 1.000000e+00 : f32
    %80 = vector.broadcast %cst_30 : f32 to vector<8x128xf32>
    %81 = arith.addf %80, %79 : vector<8x128xf32>
    %82 = tpu.reciprocal %81 {approx = true} : vector<8x128xf32> -> vector<8x128xf32>
    %83 = arith.mulf %76, %82 : vector<8x128xf32>
    %c0_31 = arith.constant 0 : index
    %c0_32 = arith.constant 0 : index
    %84 = vector.load %arg7[%c0_31, %c0_32] : memref<8x128xf32, #tpu.memory_space<vmem>>, vector<8x128xf32>
    tpu.vector_store %arg7[%c0_31, %c0_32], %83 {strides = array<i32>} : memref<8x128xf32, #tpu.memory_space<vmem>>, vector<8x128xf32>,
    return
  }
  func.func @transform_0(%arg0: i32, %arg1: memref<8xi32, #tpu.memory_space<smem>>) -> (i32, i32) {
    %c0_i32 = arith.constant 0 : i32
    %c0_i32_0 = arith.constant 0 : i32
    %c0_i32_1 = arith.constant 0 : i32
    return %c0_i32, %c0_i32_0 : i32, i32
  }
  func.func @transform_1(%arg0: i32, %arg1: memref<8xi32, #tpu.memory_space<smem>>) -> (i32, i32) {
    %c0_i32 = arith.constant 0 : i32
    %c0_i32_0 = arith.constant 0 : i32
    %c0_i32_1 = arith.constant 0 : i32
    return %c0_i32, %c0_i32_0 : i32, i32
  }
  func.func @transform_2(%arg0: i32, %arg1: memref<8xi32, #tpu.memory_space<smem>>) -> (i32, i32) {
    %c0_i32 = arith.constant 0 : i32
    %c0_i32_0 = arith.constant 0 : i32
    %c0_i32_1 = arith.constant 0 : i32
    return %c0_i32, %c0_i32_0 : i32, i32
  }
  func.func @transform_3(%arg0: i32, %arg1: memref<8xi32, #tpu.memory_space<smem>>) -> (i32, i32) {
    %c0_i32 = arith.constant 0 : i32
    %c0_i32_0 = arith.constant 0 : i32
    %c0_i32_1 = arith.constant 0 : i32
    return %c0_i32, %c0_i32_0 : i32, i32
  }
  func.func @transform_4(%arg0: i32, %arg1: memref<8xi32, #tpu.memory_space<smem>>) -> (i32, i32) {
    %c0_i32 = arith.constant 0 : i32
    %c0_i32_0 = arith.constant 0 : i32
    %c0_i32_1 = arith.constant 0 : i32
    return %c0_i32, %c0_i32_0 : i32, i32
  }
  func.func @transform_5(%arg0: i32, %arg1: memref<8xi32, #tpu.memory_space<smem>>) -> (i32, i32) {
    %c0_i32 = arith.constant 0 : i32
    %c0_i32_0 = arith.constant 0 : i32
    return %arg0, %c0_i32 : i32, i32
  }
}

</mosaic_0001>

<llo_original>
// kernel: diffusion_embedding.1
$region0: #{diffusion_embedding.1}
  #allocation0 [shape = 'u32[]', space=smem, size = 0x4, offset = 0x4, fixed_abs, tag = 'smem constant byte address 0x4 - core index']
  #allocation1 [shape = 'u32[144,128]{1,0:T(1,128)}', space=vmem, size = 0x12000, scoped, tag = 'internal scratch']
  #allocation2 [shape = 'f32[8,32]{1,0:T(8,128)}', space=vmem, size = 0x1000, scoped, tag = 'scratch operand']
  #allocation3 [shape = 's32[1]{0}', space=sflag, size = 0x4, scoped, tag = 'scoped memory for diffusion_embedding.1']
  #allocation4 [shape = 'u8[512]{0}', space=smem, size = 0x200, scoped, tag = 'prefetched SMEM operand 0']
  %s0 = inlined_call_operand.vmem [shape: s32[8], index: 0, kind: input, shape index: {}]
  %s1 = inlined_call_operand.vmem [shape: f32[500,32], index: 1, kind: input, shape index: {}]
  %s2 = inlined_call_operand.vmem [shape: bf16[32,128], index: 2, kind: input, shape index: {}]
  %s3 = inlined_call_operand.vmem [shape: f32[1,128], index: 3, kind: input, shape index: {}]
  %s4 = inlined_call_operand.vmem [shape: bf16[128,128], index: 4, kind: input, shape index: {}]
  %s5 = inlined_call_operand.vmem [shape: f32[1,128], index: 5, kind: input, shape index: {}]
  %s6 = inlined_call_operand.hbm [shape: f32[8,128], index: 6, kind: output, shape index: {}]
  %s7 = sld [smem:[#allocation0]]
  $region30: #{diffusion_embedding.1} parent=0
    _
  %s9 = ssub.s32 1, %s7
  %s10 = scalar_select 0, %s9, %s7
  %s11 = sshll.u32 %s0, 4
  %s12 = int_to_ptr.vmem [resolvable:$true] %s11
  %14 = dma.vmem_to_smem %s12, 16, [#allocation4], [#allocation3]
  %15 = dma.done [#allocation3], 16
  %16 = sfence
  $region1: #{diffusion_embedding.1} parent=0
    #allocation5 [shape = 'u8[4096]{0}', space=vmem, size = 0x1000, scoped, tag = 'output window, operand 0, single buffered']
    #allocation6 [shape = 's32[1]{0}', space=sflag, size = 0x4, scoped, tag = 'scoped memory for diffusion_embedding.1']
    %17 = vsyncpa [#allocation6], 0
    // Predicated region
    $region2: #{diffusion_embedding.1} parent=1 // pred_check
      _
    $region3: #{diffusion_embedding.1} parent=1 // pred_check_branch
      %19 = sbr.rel (0) target = $region5
    $region4: #{diffusion_embedding.1} parent=1 // pred_region
      _
    $region5: #{diffusion_embedding.1} parent=1 // pred_fallthru
      _
    // Predicated region
    $region6: #{diffusion_embedding.1} parent=1 // pred_check
      _
    $region7: #{diffusion_embedding.1} parent=1 // pred_check_branch
      %21 = sbr.rel (0) target = $region9
    $region8: #{diffusion_embedding.1} parent=1 // pred_region
      _
    $region9: #{diffusion_embedding.1} parent=1 // pred_fallthru
      _
    // Predicated region
    $region10: #{diffusion_embedding.1} parent=1 // pred_check
      _
    $region11: #{diffusion_embedding.1} parent=1 // pred_check_branch
      %23 = sbr.rel (0) target = $region13
    $region12: #{diffusion_embedding.1} parent=1 // pred_region
      _
    $region13: #{diffusion_embedding.1} parent=1 // pred_fallthru
      _
    // Predicated region
    $region14: #{diffusion_embedding.1} parent=1 // pred_check
      _
    $region15: #{diffusion_embedding.1} parent=1 // pred_check_branch
      %25 = sbr.rel (0) target = $region17
    $region16: #{diffusion_embedding.1} parent=1 // pred_region
      _
    $region17: #{diffusion_embedding.1} parent=1 // pred_fallthru
      _
    // Predicated region
    $region18: #{diffusion_embedding.1} parent=1 // pred_check
      _
    $region19: #{diffusion_embedding.1} parent=1 // pred_check_branch
      %27 = sbr.rel (0) target = $region21
    $region20: #{diffusion_embedding.1} parent=1 // pred_region
      _
    $region21: #{diffusion_embedding.1} parent=1 // pred_fallthru
      _
    %s29 = smul.u32 0, 8
    %s30 = sld [smem:[#allocation4 + %s29]]
    %s31 = scalar_lea.vmem %s1, %s30
    %v32 = vld [vmem:[%s31] sm:$0x1]
    %vm33 = vcmask 253952
    %34 = vst.msk [vmem:[#allocation2] sm:$0x1] %vm33, %v32
    %s35 = sadd.s32 %s29, 1
    %s36 = sld [smem:[#allocation4 + %s35]]
    %s37 = scalar_lea.vmem %s1, %s36
    %v38 = vld [vmem:[%s37] sm:$0x1]
    %39 = vst.msk [vmem:[#allocation2 + $0x1] sm:$0x1] %vm33, %v38
    %s40 = sadd.s32 %s29, 2
    %s41 = sld [smem:[#allocation4 + %s40]]
    %s42 = scalar_lea.vmem %s1, %s41
    %v43 = vld [vmem:[%s42] sm:$0x1]
    %44 = vst.msk [vmem:[#allocation2 + $0x2] sm:$0x1] %vm33, %v43
    %s45 = sadd.s32 %s29, 3
    %s46 = sld [smem:[#allocation4 + %s45]]
    %s47 = scalar_lea.vmem %s1, %s46
    %v48 = vld [vmem:[%s47] sm:$0x1]
    %49 = vst.msk [vmem:[#allocation2 + $0x3] sm:$0x1] %vm33, %v48
    %s50 = sadd.s32 %s29, 4
    %s51 = sld [smem:[#allocation4 + %s50]]
    %s52 = scalar_lea.vmem %s1, %s51
    %v53 = vld [vmem:[%s52] sm:$0x1]
    %54 = vst.msk [vmem:[#allocation2 + $0x4] sm:$0x1] %vm33, %v53
    %s55 = sadd.s32 %s29, 5
    %s56 = sld [smem:[#allocation4 + %s55]]
    %s57 = scalar_lea.vmem %s1, %s56
    %v58 = vld [vmem:[%s57] sm:$0x1]
    %59 = vst.msk [vmem:[#allocation2 + $0x5] sm:$0x1] %vm33, %v58
    %s60 = sadd.s32 %s29, 6
    %s61 = sld [smem:[#allocation4 + %s60]]
    %s62 = scalar_lea.vmem %s1, %s61
    %v63 = vld [vmem:[%s62] sm:$0x1]
    %64 = vst.msk [vmem:[#allocation2 + $0x6] sm:$0x1] %vm33, %v63
    %s65 = sadd.s32 %s29, 7
    %s66 = sld [smem:[#allocation4 + %s65]]
    %s67 = scalar_lea.vmem %s1, %s66
    %v68 = vld [vmem:[%s67] sm:$0x1]
    %69 = vst.msk [vmem:[#allocation2 + $0x7] sm:$0x1] %vm33, %v68
    %v70 = vld [vmem:[#allocation2] sm:$0xff]
    %v71 = vpack.c.bf16 %v70, %v70
    %v72 = vld [vmem:[%s2] sm:$0xf]
    %v73 = vld [vmem:[%s2 + $0x4] sm:$0xf]
    %v74 = vld [vmem:[%s2 + $0x8] sm:$0xf]
    %v75 = vld [vmem:[%s2 + $0xc] sm:$0xf]
    %v76 = vld [vmem:[%s3] sm:$0x1]
    %v78 = vlaneseq
    %v79 = vshrl.u32 %v78, 7
    %v80 = vsub.s32 0, %v79
    %v81 = vrot.slane %v76, %v80
    %v87 = vunpack.c.l.b16 %v72
    %v88 = vunpack.c.l.b16 %v73
    %v89 = vunpack.c.l.b16 %v74
    %v90 = vunpack.c.l.b16 %v75
    %v91 = vpack.c.b16 %v88, %v87
    %v92 = vpack.c.b16 %v90, %v89
    %vm95 = vcmask 261120
    %v97 = vsel %vm95, %v71, 0
    %99 = vmatprep.subr.bf16.mxu0 0
    %100 = vmatpush1.bf16.msra.mxu0 0
    %101 = vmatprep.subr.bf16.mxu0 0
    %102 = vmatpush1.bf16.msra.mxu0 0
    %103 = vmatprep.subr.bf16.mxu0 0
    %104 = vmatpush1.bf16.msra.mxu0 0
    %105 = vmatprep.subr.bf16.mxu0 0
    %106 = vmatpush1.bf16.msra.mxu0 0
    %107 = vmatprep.subr.bf16.mxu0 0
    %108 = vmatpush1.bf16.msra.mxu0 0
    %109 = vmatprep.subr.bf16.mxu0 0
    %110 = vmatpush1.bf16.msra.mxu0 0
    %111 = vmatprep.subr.bf16.mxu0 0
    %112 = vmatpush1.bf16.msra.mxu0 %v92
    %113 = vmatprep.subr.bf16.mxu0 0
    %114 = vmatpush1.bf16.msra.mxu0 %v91
    %115 = vmatprep.subr.bf16.mxu0 0
    %116 = vmatpush2.bf16.msra.mxu0 0
    %117 = vmatprep.subr.bf16.mxu0 0
    %118 = vmatpush2.bf16.msra.mxu0 0
    %119 = vmatprep.subr.bf16.mxu0 0
    %120 = vmatpush2.bf16.msra.mxu0 0
    %121 = vmatprep.subr.bf16.mxu0 0
    %122 = vmatpush2.bf16.msra.mxu0 0
    %123 = vmatprep.subr.bf16.mxu0 0
    %124 = vmatpush2.bf16.msra.mxu0 0
    %125 = vmatprep.subr.bf16.mxu0 0
    %126 = vmatpush2.bf16.msra.mxu0 0
    %127 = vmatprep.subr.bf16.mxu0 0
    %128 = vmatpush2.bf16.msra.mxu0 0
    %129 = vmatprep.subr.bf16.mxu0 0
    %130 = vmatpush2.bf16.msra.mxu0 0
    %131 = vmatprep.mubr.bf16.mxu0 0
    %132 = vmatmul.mubr.bf16.gmra.mxu0 %v97
    %v133 = vpop.f32.mrf.mxu0
    %v134 = vadd.f32 %v81, %v133
    %v135 = vpop.f32.mrf.mxu0
    %v136 = vpop.f32.mrf.mxu0
    %v137 = vpop.f32.mrf.mxu0
    %138 = vdwg.mxu0
    %v139 = vsub.f32 0.0, %v134
    %v140 = vmul.f32 %v139, 1.442695
    %v141 = vpow.pop %v140
    %v142 = vadd.f32 %v141, 1.0
    %v143 = vrcp.pop %v142
    %v144 = vmul.f32 %v134, %v143
    %v145 = vpack.c.bf16 %v144, %v144
    %v146 = vld [vmem:[%s4] sm:$0xf]
    %v147 = vld [vmem:[%s4 + $0x4] sm:$0xf]
    %v148 = vld [vmem:[%s4 + $0x8] sm:$0xf]
    %v149 = vld [vmem:[%s4 + $0xc] sm:$0xf]
    %v150 = vld [vmem:[%s4 + $0x10] sm:$0xf]
    %v151 = vld [vmem:[%s4 + $0x14] sm:$0xf]
    %v152 = vld [vmem:[%s4 + $0x18] sm:$0xf]
    %v153 = vld [vmem:[%s4 + $0x1c] sm:$0xf]
    %v154 = vld [vmem:[%s4 + $0x20] sm:$0xf]
    %v155 = vld [vmem:[%s4 + $0x24] sm:$0xf]
    %v156 = vld [vmem:[%s4 + $0x28] sm:$0xf]
    %v157 = vld [vmem:[%s4 + $0x2c] sm:$0xf]
    %v158 = vld [vmem:[%s4 + $0x30] sm:$0xf]
    %v159 = vld [vmem:[%s4 + $0x34] sm:$0xf]
    %v160 = vld [vmem:[%s4 + $0x38] sm:$0xf]
    %v161 = vld [vmem:[%s4 + $0x3c] sm:$0xf]
    %v162 = vld [vmem:[%s5] sm:$0x1]
    %v164 = vlaneseq
    %v165 = vshrl.u32 %v164, 7
    %v166 = vsub.s32 0, %v165
    %v167 = vrot.slane %v162, %v166
    %v185 = vunpack.c.l.b16 %v146
    %v186 = vunpack.c.l.b16 %v147
    %v187 = vunpack.c.l.b16 %v148
    %v188 = vunpack.c.l.b16 %v149
    %v189 = vunpack.c.l.b16 %v150
    %v190 = vunpack.c.l.b16 %v151
    %v191 = vunpack.c.l.b16 %v152
    %v192 = vunpack.c.l.b16 %v153
    %v193 = vunpack.c.l.b16 %v154
    %v194 = vunpack.c.l.b16 %v155
    %v195 = vunpack.c.l.b16 %v156
    %v196 = vunpack.c.l.b16 %v157
    %v197 = vunpack.c.l.b16 %v158
    %v198 = vunpack.c.l.b16 %v159
    %v199 = vunpack.c.l.b16 %v160
    %v200 = vunpack.c.l.b16 %v161
    %v201 = vpack.c.b16 %v186, %v185
    %v202 = vpack.c.b16 %v188, %v187
    %v203 = vpack.c.b16 %v190, %v189
    %v204 = vpack.c.b16 %v192, %v191
    %v205 = vpack.c.b16 %v194, %v193
    %v206 = vpack.c.b16 %v196, %v195
    %v207 = vpack.c.b16 %v198, %v197
    %v208 = vpack.c.b16 %v200, %v199
    %217 = vmatprep.subr.bf16.mxu0 0
    %218 = vmatpush1.bf16.msra.mxu0 %v208
    %219 = vmatprep.subr.bf16.mxu0 0
    %220 = vmatpush1.bf16.msra.mxu0 %v207
    %221 = vmatprep.subr.bf16.mxu0 0
    %222 = vmatpush1.bf16.msra.mxu0 %v206
    %223 = vmatprep.subr.bf16.mxu0 0
    %224 = vmatpush1.bf16.msra.mxu0 %v205
    %225 = vmatprep.subr.bf16.mxu0 0
    %226 = vmatpush1.bf16.msra.mxu0 %v204
    %227 = vmatprep.subr.bf16.mxu0 0
    %228 = vmatpush1.bf16.msra.mxu0 %v203
    %229 = vmatprep.subr.bf16.mxu0 0
    %230 = vmatpush1.bf16.msra.mxu0 %v202
    %231 = vmatprep.subr.bf16.mxu0 0
    %232 = vmatpush1.bf16.msra.mxu0 %v201
    %233 = vmatprep.subr.bf16.mxu0 0
    %234 = vmatpush2.bf16.msra.mxu0 0
    %235 = vmatprep.subr.bf16.mxu0 0
    %236 = vmatpush2.bf16.msra.mxu0 0
    %237 = vmatprep.subr.bf16.mxu0 0
    %238 = vmatpush2.bf16.msra.mxu0 0
    %239 = vmatprep.subr.bf16.mxu0 0
    %240 = vmatpush2.bf16.msra.mxu0 0
    %241 = vmatprep.subr.bf16.mxu0 0
    %242 = vmatpush2.bf16.msra.mxu0 0
    %243 = vmatprep.subr.bf16.mxu0 0
    %244 = vmatpush2.bf16.msra.mxu0 0
    %245 = vmatprep.subr.bf16.mxu0 0
    %246 = vmatpush2.bf16.msra.mxu0 0
    %247 = vmatprep.subr.bf16.mxu0 0
    %248 = vmatpush2.bf16.msra.mxu0 0
    %249 = vmatprep.mubr.bf16.mxu0 0
    %250 = vmatmul.mubr.bf16.gmra.mxu0 %v145
    %v251 = vpop.f32.mrf.mxu0
    %v252 = vadd.f32 %v167, %v251
    %v253 = vpop.f32.mrf.mxu0
    %v254 = vpop.f32.mrf.mxu0
    %v255 = vpop.f32.mrf.mxu0
    %256 = vdwg.mxu0
    %v257 = vsub.f32 0.0, %v252
    %v258 = vmul.f32 %v257, 1.442695
    %v259 = vpow.pop %v258
    %v260 = vadd.f32 %v259, 1.0
    %v261 = vrcp.pop %v260
    %v262 = vmul.f32 %v252, %v261
    %263 = vst [vmem:[#allocation5] sm:$0xff] %v262
    // Predicated region
    $region22: #{diffusion_embedding.1} parent=1 // pred_check
      _
    $region23: #{diffusion_embedding.1} parent=1 // pred_check_branch
      %265 = sbr.rel (0) target = $region25
    $region24: #{diffusion_embedding.1} parent=1 // pred_region
      %s267 = ssub.s32 128, 128
      %268 = vsyncadd [#allocation6], %s267
      %s270 = sshll.u32 [#allocation5], 4
      %s271 = int_to_ptr.vmem [resolvable:$true] %s270
      %273 = dma.vmem_to_hbm [thread:$0]  %s271, 128, %s6, [#allocation6]
    $region25: #{diffusion_embedding.1} parent=1 // pred_fallthru
      _
    // Predicated region
    $region26: #{diffusion_embedding.1} parent=1 // pred_check
      _
    $region27: #{diffusion_embedding.1} parent=1 // pred_check_branch
      %275 = sbr.rel (0) target = $region29
    $region28: #{diffusion_embedding.1} parent=1 // pred_region
      %276 = dma.done [#allocation6], 128
    $region29: #{diffusion_embedding.1} parent=1 // pred_fallthru
      _
    %277 = vsyncpa [#allocation6], 1

</llo_original>
